<compile_context>
chip_gen: v6e
topology: v6e:2x2x1
jax: 0.10.0
libtpu: 0.0.40
codegen_flags: <defaults>
</compile_context>

<pallas_src>
import functools
import math

import jax
import jax.numpy as jnp
from jax import lax
from jax.experimental import pallas as pl
from jax.experimental.pallas import tpu as pltpu


def _round_up(x, m):
    return ((x + m - 1) // m) * m


def _cdiv(a, b):
    return -(-a // b)


# -----------------------------------------------------------------------------
# Pallas kernel 1: compress_key as an im2col matmul + bias + LeakyReLU(0.1).
#   p_ref: (Mp, Kp) patches   w_ref: (Kp, Np) weights   b_ref: (1, Np) bias
#   o_ref: (Mp, Np)
# -----------------------------------------------------------------------------
def _compress_matmul_kernel(p_ref, w_ref, b_ref, o_ref):
    y = jnp.dot(p_ref[...], w_ref[...], preferred_element_type=jnp.float32)
    y = y + b_ref[...]
    o_ref[...] = jnp.where(y >= 0.0, y, 0.1 * y)  # LeakyReLU(0.1)


def compress_key(representation, weight, bias, kernel_size):
    """Conv2d(R, Cout, K, padding=ceil((K-1)/2), padding_mode='reflect') + LeakyReLU(0.1)."""
    B, R, Hr, Wr = representation.shape
    Cout = weight.shape[0]
    K = kernel_size
    pc = math.ceil((K - 1) / 2)
    assert pc < Hr and pc < Wr, "reflect padding must be smaller than spatial extent"
    rep_pad = jnp.pad(representation.astype(jnp.float32),
                      ((0, 0), (0, 0), (pc, pc), (pc, pc)), mode="reflect")
    Ho = Hr + 2 * pc - K + 1
    Wo = Wr + 2 * pc - K + 1

    # im2col glue: rows = B*Ho*Wo positions, cols = R*K*K in (r, kh, kw) order
    # to match the OIHW weight reshape.
    cols = []
    for dy in range(K):
        for dx in range(K):
            cols.append(rep_pad[:, :, dy:dy + Ho, dx:dx + Wo])  # (B, R, Ho, Wo)
    patches = jnp.stack(cols, axis=2)                           # (B, R, K*K, Ho, Wo)
    patches = patches.transpose(0, 3, 4, 1, 2).reshape(B * Ho * Wo, R * K * K)

    M, Kd, N = B * Ho * Wo, R * K * K, Cout
    Mp, Kp, Np = _round_up(M, 8), _round_up(Kd, 128), _round_up(N, 128)

    p_pad = jnp.pad(patches, ((0, Mp - M), (0, Kp - Kd)))
    w_pad = jnp.pad(weight.reshape(Cout, Kd).T.astype(jnp.float32),
                    ((0, Kp - Kd), (0, Np - N)))
    b_pad = jnp.pad(bias.astype(jnp.float32)[None, :], ((0, 0), (0, Np - N)))

    cost = pl.CostEstimate(
        flops=2 * M * Kd * N + 4 * M * N,
        transcendentals=0,
        bytes_accessed=4 * (Mp * Kp + Kp * Np + Np + Mp * Np))

    out = pl.pallas_call(
        _compress_matmul_kernel,
        out_shape=jax.ShapeDtypeStruct((Mp, Np), jnp.float32),
        cost_estimate=cost,
    )(p_pad, w_pad, b_pad)

    out = out[:M, :N].reshape(B, Ho, Wo, Cout).transpose(0, 3, 1, 2)
    return out  # (B, Cout, Ho, Wo) -- Ho == Wo == K for odd K


# -----------------------------------------------------------------------------
# Pallas kernel 2: per-(batch, channel) dynamic grouped conv, channels on lanes.
#   x_ref: (th+K-1, Wp, ct)  one H strip (with halo) of one lane tile of channels
#   k_ref: (K*K, ct)         per-channel kernel taps for the same lane tile
#   o_ref: (th, Wo, ct)
# -----------------------------------------------------------------------------
def _dyn_conv_kernel(x_ref, k_ref, o_ref, *, K):
    TH, Wo, Ct = o_ref.shape
    KK = K * K
    acc_dt = jnp.float32
    lanes = Ct // 128

    # W chunking keeps the per-row accumulator at <= 16 vregs regardless of
    # image width / lane-tile width.
    wc = Wo if _cdiv(Wo, 8) * lanes <= 16 else max(8, 128 // lanes)
    n_wc = _cdiv(Wo, wc)
    single = wc >= Wo

    # Hoist the K*K taps out of the row loop once (JAX does not CSE
    # broadcast_in_dim).  Pre-broadcast to (Wo, Ct) only if all KK slabs fit
    # comfortably in the 64-vreg file; otherwise keep (1, Ct) rows and let the
    # MAC broadcast along sublanes (fixes the old spill-prone heuristic).
    full_bcast = single and (KK * _cdiv(Wo, 8) * lanes <= 24)
    taps = []
    for t in range(KK):
        row = k_ref[t:t + 1, :].astype(acc_dt)                 # (1, Ct)
        taps.append(jnp.broadcast_to(row, (Wo, Ct)) if full_bcast else row)

    # TODO(synk): on v5e (vld-bound) the j=1..K-1 sublane-shifted loads could be
    # replaced by K row loads + pltpu.roll on the idle XLU slot.
    def row_body(h, carry):
        for w0 in range(0, Wo, wc):
            wl = min(wc, Wo - w0)
            # Initialise the accumulator with the first tap product (saves the
            # zeros-init + extra add on the VALU slot).
            acc = x_ref[h, w0:w0 + wl, :].astype(acc_dt) * taps[0]
            for t in range(1, KK):
                i, j = t // K, t % K
                # i -> row offset, j -> sublane offset; lanes (channels) untouched.
                acc = acc + x_ref[h + i, w0 + j:w0 + j + wl, :].astype(acc_dt) * taps[t]
            o_ref[h, w0:w0 + wl, :] = acc.astype(o_ref.dtype)
        return carry

    unroll = True if TH * n_wc <= 32 else 8
    lax.fori_loop(0, TH, row_body, 0, unroll=unroll)


def _pick_tiles(Ho, Wp, Wo, Np, K, in_bytes, out_bytes):
    """Pick (H tile, lane tile) from a VMEM/vreg budget."""
    # Lane tile capped at 256 (vreg pressure + keeps the channel grid axis long
    # enough for pipelining / v7x megacore sharding).
    ct = 256 if Np % 256 == 0 else 128

    if Ho <= 8:
        return Ho, ct

    # Keep the double-buffered working set around ~24 MiB (fits v7x's 64 MiB
    # physical VMEM with margin) and guarantee >= 2 grid steps along H.
    budget = 24 << 20
    per_row = 2 * Wp * ct * in_bytes + 2 * Wo * ct * out_bytes
    th = budget // per_row - (K - 1)
    th = min(th, Ho, _cdiv(Ho, 2))          # n_h >= 2
    th = max(8, (th // 8) * 8)
    return int(th), ct


def sconv_forward(x, representation, weight, bias, kernel_size, *, storage_dtype=None):
    """Exact semantics of SConv.forward (F.conv2d is cross-correlation, no flip).

    storage_dtype: dtype of the channels-last HBM staging copies fed to the
      Pallas kernel (default: x.dtype, i.e. exact f32 semantics).  Pass
      jnp.bfloat16 to halve HBM traffic on memory-bound v5e/v6e; accumulation
      is always f32 and the output keeps x.dtype.
    """
    B, Cin, H, W = x.shape
    K = kernel_size
    p = K // 2  # reflection_padding
    assert p < H and p < W, "reflect padding must be smaller than spatial extent"

    out_dtype = x.dtype
    st_dtype = jnp.dtype(storage_dtype) if storage_dtype is not None else jnp.dtype(x.dtype)

    # kernel = compress_key(representation).view(-1, 1, K, K)
    kernels = compress_key(representation, weight, bias, K)  # (B, Cout, K, K) f32
    assert kernels.shape[2] == K and kernels.shape[3] == K, \
        "compress_key spatial output must equal kernel_size (odd K assumed)"
    Cout = kernels.shape[1]
    assert Cout % Cin == 0
    m = Cout // Cin  # output channels per group in the grouped conv
    KK = K * K

    xpad = jnp.pad(x, ((0, 0), (0, 0), (p, p), (p, p)), mode="reflect")
    Hp, Wp = H + 2 * p, W + 2 * p
    Ho, Wo = Hp - K + 1, Wp - K + 1  # == H, W for odd K

    # Channels-on-lanes, WITHOUT jnp.repeat: x carries only the B*Cin input
    # channels; the m-fold fan-out is an innermost grid axis whose x index_map
    # is constant, so the input VMEM tile is reused without re-DMA.
    N_in = B * Cin
    Np = _round_up(N_in, 128)

    in_bytes = jnp.dtype(st_dtype).itemsize
    out_bytes = jnp.dtype(out_dtype).itemsize
    th, ct = _pick_tiles(Ho, Wp, Wo, Np, K, in_bytes, out_bytes)
    n_h = _cdiv(Ho, th)
    n_c = Np // ct
    Ho_p = n_h * th

    # Channels-last staging copy of the padded input.  (The NCHW->channels-last
    # transpose is one HBM pass; keeping activations channels-last across the
    # surrounding network would remove it.)
    x_cl = xpad.reshape(N_in, Hp, Wp).transpose(1, 2, 0).astype(st_dtype)   # (Hp, Wp, N_in)
    x_cl = jnp.pad(x_cl, ((0, Ho_p - Ho), (0, 0), (0, Np - N_in)))
    # Overlapping H strips give each grid step its K-1 row halo with plain
    # Blocked BlockSpecs (duplication is only (K-1)/th of the input).
    # TODO(synk): pl.Element indexing on the H dim would avoid even that copy.
    x_strips = jnp.stack(
        [lax.slice_in_dim(x_cl, h * th, h * th + th + K - 1, axis=0) for h in range(n_h)],
        axis=0)                                                  # (n_h, th+K-1, Wp, Np)

    # Per-channel taps, grouped by the m sub-index:
    #   taps[mi, t, b*Cin+ci] = kernels[b, ci*m + mi, t//K, t%K]
    taps = kernels.reshape(B, Cin, m, KK).transpose(2, 3, 0, 1).reshape(m, KK, N_in)
    taps = jnp.pad(taps, ((0, 0), (0, 0), (0, Np - N_in))).astype(st_dtype)

    x_blk = (th + K - 1) * Wp * ct * in_bytes
    o_blk = th * Wo * ct * out_bytes
    k_blk = KK * ct * in_bytes
    vmem_limit = int(min(max(2 * (x_blk + o_blk + k_blk) + (8 << 20), 32 << 20), 64 << 20))

    cost = pl.CostEstimate(
        flops=2 * Ho * Wo * B * Cout * KK,
        transcendentals=0,
        bytes_accessed=int(n_h * (th + K - 1) * Wp * Np * in_bytes
                           + m * KK * Np * in_bytes
                           + m * Ho_p * Wo * Np * out_bytes))

    kernel = functools.partial(_dyn_conv_kernel, K=K)
    out = pl.pallas_call(
        kernel,
        out_shape=jax.ShapeDtypeStruct((m, Ho_p, Wo, Np), out_dtype),
        grid=(n_h, n_c, m),
        in_specs=[
            # one H strip (with halo) of one lane tile; independent of mi so the
            # tile is NOT re-fetched across the innermost m axis
            pl.BlockSpec((None, th + K - 1, Wp, ct), lambda h, c, mi: (h, 0, 0, c)),
            # kernel taps for this (mi, lane-tile)
            pl.BlockSpec((None, KK, ct), lambda h, c, mi: (mi, 0, c)),
        ],
        out_specs=pl.BlockSpec((None, th, Wo, ct), lambda h, c, mi: (mi, h, 0, c)),
        compiler_params=pltpu.CompilerParams(
            dimension_semantics=("parallel", "parallel", "arbitrary"),
            vmem_limit_bytes=vmem_limit),
        cost_estimate=cost,
    )(x_strips, taps)

    # (m, Ho_p, Wo, Np) -> (B, Cout, H, W) with cout = ci*m + mi  (== out.view(b,-1,h,w))
    out = out[:, :Ho, :, :N_in].transpose(3, 0, 1, 2)            # (N_in, m, Ho, Wo)
    out = out.reshape(B, Cin, m, Ho, Wo).reshape(B, Cout, Ho, Wo)
    return out


# -----------------------------------------------------------------------------
# Pure-JAX reference (same math, no Pallas) for a correctness check.
# -----------------------------------------------------------------------------
def reference_forward(x, representation, weight, bias, K):
    pc = math.ceil((K - 1) / 2)
    rep_pad = jnp.pad(representation, ((0, 0), (0, 0), (pc, pc), (pc, pc)),
                      mode="reflect")
    kern = jax.lax.conv_general_dilated(
        rep_pad, weight, window_strides=(1, 1), padding="VALID",
        dimension_numbers=("NCHW", "OIHW", "NCHW"))
    kern = kern + bias[None, :, None, None]
    kern = jnp.where(kern >= 0.0, kern, 0.1 * kern)

    B, Cin, H, W = x.shape
    Cout = kern.shape[1]
    m = Cout // Cin
    p = K // 2
    xpad = jnp.pad(x, ((0, 0), (0, 0), (p, p), (p, p)), mode="reflect")
    xpf = xpad.reshape(B * Cin, H + 2 * p, W + 2 * p)
    kf = kern.reshape(B * Cout, K, K)
    idx = jnp.arange(B * Cout) // m
    out = jnp.zeros((B * Cout, H, W), jnp.float32)
    for i in range(K):
        for j in range(K):
            out = out + xpf[idx, i:i + H, j:j + W] * kf[:, i, j][:, None, None]
    return out.reshape(B, Cout, H, W)


if __name__ == "__main__":
    key = jax.random.PRNGKey(0)
    B, Cin, H, W = 2, 4, 16, 16   # x
    K = 3                         # kernel_size
    R = 8                         # representation_dim

    kx, kr, kw1, kb1, kw2, kb2 = jax.random.split(key, 6)
    x = jax.random.normal(kx, (B, Cin, H, W), jnp.float32)
    representation = jax.random.normal(kr, (B, R, K, K), jnp.float32)

    def make_conv_params(k1, k2, cout):
        # Deterministic Conv2d(R, cout, K) params (PyTorch-default-style uniform init).
        fan_in = R * K * K
        bound = 1.0 / math.sqrt(fan_in)
        w = jax.random.uniform(k1, (cout, R, K, K), jnp.float32, -bound, bound)
        b = jax.random.uniform(k2, (cout,), jnp.float32, -bound, bound)
        return w, b

    # Case 1: out_channels == in_channels (m = 1).
    w1, b1 = make_conv_params(kw1, kb1, Cin)
    out1 = jax.block_until_ready(sconv_forward(x, representation, w1, b1, K))
    assert out1.shape == (B, Cin, H, W), out1.shape
    ref1 = reference_forward(x, representation, w1, b1, K)
    assert jnp.allclose(out1, ref1, atol=1e-3, rtol=1e-3), \
        float(jnp.max(jnp.abs(out1 - ref1)))

    # Case 2: out_channels = 2 * in_channels (m = 2, grouped-conv fan-out path,
    # exercised without jnp.repeat thanks to the innermost m grid axis).
    w2, b2 = make_conv_params(kw2, kb2, 2 * Cin)
    out2 = jax.block_until_ready(sconv_forward(x, representation, w2, b2, K))
    assert out2.shape == (B, 2 * Cin, H, W), out2.shape
    ref2 = reference_forward(x, representation, w2, b2, K)
    assert jnp.allclose(out2, ref2, atol=1e-3, rtol=1e-3), \
        float(jnp.max(jnp.abs(out2 - ref2)))

    print("KERNEL_OK")
</pallas_src>

<mosaic_0001>
module attributes {stable_mosaic.version = 11 : i64} {
  func.func @_compress_matmul_kernel(%arg0: memref<24x128xf32, #tpu.memory_space<vmem>>, %arg1: memref<128x128xf32, #tpu.memory_space<vmem>>, %arg2: memref<1x128xf32, #tpu.memory_space<vmem>>, %arg3: memref<24x128xf32, #tpu.memory_space<vmem>>) attributes {dimension_semantics = [], scalar_prefetch = 0 : i64, scratch_operands = 0 : i64, tpu.core_type = #tpu.core_type<tc>} {
    %c0 = arith.constant 0 : index
    %c0_0 = arith.constant 0 : index
    %0 = vector.load %arg0[%c0, %c0_0] : memref<24x128xf32, #tpu.memory_space<vmem>>, vector<24x128xf32>
    %c0_1 = arith.constant 0 : index
    %c0_2 = arith.constant 0 : index
    %1 = vector.load %arg1[%c0_1, %c0_2] : memref<128x128xf32, #tpu.memory_space<vmem>>, vector<128x128xf32>
    %cst = arith.constant dense<0.000000e+00> : vector<24x128xf32>
    %2 = tpu.matmul %0, %1, %cst {dimension_numbers = #tpu.dot_dimension_numbers<[1], [0], [0], [1], [0, 0, 1, 1], [], []>} : vector<24x128xf32>, vector<128x128xf32>, vector<24x128xf32> -> vector<24x128xf32>
    %c0_3 = arith.constant 0 : index
    %c0_4 = arith.constant 0 : index
    %3 = vector.load %arg2[%c0_3, %c0_4] : memref<1x128xf32, #tpu.memory_space<vmem>>, vector<1x128xf32>
    %4 = vector.broadcast %3 : vector<1x128xf32> to vector<24x128xf32>
    %5 = arith.addf %2, %4 : vector<24x128xf32>
    %cst_5 = arith.constant 0.000000e+00 : f32
    %6 = vector.broadcast %cst_5 : f32 to vector<24x128xf32>
    %7 = arith.cmpf oge, %5, %6 : vector<24x128xf32>
    %cst_6 = arith.constant 1.000000e-01 : f32
    %8 = vector.broadcast %cst_6 : f32 to vector<24x128xf32>
    %9 = arith.mulf %8, %5 : vector<24x128xf32>
    %10 = arith.select %7, %5, %9 : vector<24x128xi1>, vector<24x128xf32>
    %c0_7 = arith.constant 0 : index
    %c0_8 = arith.constant 0 : index
    %11 = vector.load %arg3[%c0_7, %c0_8] : memref<24x128xf32, #tpu.memory_space<vmem>>, vector<24x128xf32>
    tpu.vector_store %arg3[%c0_7, %c0_8], %10 {strides = array<i32>} : memref<24x128xf32, #tpu.memory_space<vmem>>, vector<24x128xf32>,
    return
  }
}

</mosaic_0001>

<llo_original>
// kernel: tpu_custom_call.1
$region0: #{tpu_custom_call.1}
  #allocation0 [shape = 'u32[]', space=smem, size = 0x4, offset = 0x4, fixed_abs, tag = 'smem constant byte address 0x4 - core index']
  #allocation1 [shape = 'u32[144,128]{1,0:T(1,128)}', space=vmem, size = 0x12000, scoped, tag = 'internal scratch']
  %s0 = inlined_call_operand.hbm [shape: f32[24,128], index: 0, kind: input, shape index: {}]
  %s1 = inlined_call_operand.hbm [shape: f32[128,128], index: 1, kind: input, shape index: {}]
  %s2 = inlined_call_operand.vmem [shape: f32[1,128], index: 2, kind: input, shape index: {}]
  %s3 = inlined_call_operand.hbm [shape: f32[24,128], index: 3, kind: output, shape index: {}]
  %s4 = sld [smem:[#allocation0]]
  $region30: #{tpu_custom_call.1} parent=0
    _
  %s6 = ssub.s32 1, %s4
  %s7 = scalar_select 0, %s6, %s4
  $region1: #{tpu_custom_call.1} parent=0
    #allocation2 [shape = 'u8[12288]{0}', space=vmem, size = 0x3000, scoped, tag = 'input window, operand 0, single buffered']
    #allocation3 [shape = 's32[1]{0}', space=sflag, size = 0x4, scoped, tag = 'scoped memory for tpu_custom_call.1']
    #allocation4 [shape = 's32[1]{0}', space=sflag, size = 0x4, scoped, tag = 'scoped memory for tpu_custom_call.1']
    #allocation5 [shape = 'u8[65536]{0}', space=vmem, size = 0x10000, scoped, tag = 'input window, operand 1, single buffered']
    #allocation6 [shape = 's32[1]{0}', space=sflag, size = 0x4, scoped, tag = 'scoped memory for tpu_custom_call.1']
    #allocation7 [shape = 'u8[12288]{0}', space=vmem, size = 0x3000, scoped, tag = 'output window, operand 0, single buffered']
    %8 = vsyncpa [#allocation3], 0
    %9 = vsyncpa [#allocation6], 0
    %10 = vsyncpa [#allocation4], 0
    // Predicated region
    $region2: #{tpu_custom_call.1} parent=1 // pred_check
      _
    $region3: #{tpu_custom_call.1} parent=1 // pred_check_branch
      %12 = sbr.rel (0) target = $region5
    $region4: #{tpu_custom_call.1} parent=1 // pred_region
      %s14 = ssub.s32 384, 384
      %15 = vsyncadd [#allocation3], %s14
      %s16 = sshll.u32 [#allocation2], 4
      %s17 = int_to_ptr.vmem [resolvable:$true] %s16
      %22 = dma.hbm_to_vmem [thread:$0]  %s0, 384, %s17, [#allocation3], 128, 128, 8
    $region5: #{tpu_custom_call.1} parent=1 // pred_fallthru
      _
    // Predicated region
    $region6: #{tpu_custom_call.1} parent=1 // pred_check
      _
    $region7: #{tpu_custom_call.1} parent=1 // pred_check_branch
      %24 = sbr.rel (0) target = $region9
    $region8: #{tpu_custom_call.1} parent=1 // pred_region
      %s26 = ssub.s32 2048, 2048
      %27 = vsyncadd [#allocation6], %s26
      %s28 = sshll.u32 [#allocation5], 4
      %s29 = int_to_ptr.vmem [resolvable:$true] %s28
      %34 = dma.hbm_to_vmem [thread:$0]  %s1, 2048, %s29, [#allocation6], 128, 128, 8
    $region9: #{tpu_custom_call.1} parent=1 // pred_fallthru
      _
    // Predicated region
    $region10: #{tpu_custom_call.1} parent=1 // pred_check
      _
    $region11: #{tpu_custom_call.1} parent=1 // pred_check_branch
      %36 = sbr.rel (0) target = $region13
    $region12: #{tpu_custom_call.1} parent=1 // pred_region
      _
    $region13: #{tpu_custom_call.1} parent=1 // pred_fallthru
      _
    // Predicated region
    $region14: #{tpu_custom_call.1} parent=1 // pred_check
      _
    $region15: #{tpu_custom_call.1} parent=1 // pred_check_branch
      %38 = sbr.rel (0) target = $region17
    $region16: #{tpu_custom_call.1} parent=1 // pred_region
      %39 = dma.done [#allocation3], 384
    $region17: #{tpu_custom_call.1} parent=1 // pred_fallthru
      _
    // Predicated region
    $region18: #{tpu_custom_call.1} parent=1 // pred_check
      _
    $region19: #{tpu_custom_call.1} parent=1 // pred_check_branch
      %41 = sbr.rel (0) target = $region21
    $region20: #{tpu_custom_call.1} parent=1 // pred_region
      %42 = dma.done [#allocation6], 2048
    $region21: #{tpu_custom_call.1} parent=1 // pred_fallthru
      _
    %v43 = vld [vmem:[#allocation2] sm:$0xff]
    %v44 = vld [vmem:[#allocation2 + $0x8] sm:$0xff]
    %v45 = vld [vmem:[#allocation2 + $0x10] sm:$0xff]
    %v46 = vld [vmem:[#allocation5] sm:$0xff]
    %v47 = vld [vmem:[#allocation5 + $0x8] sm:$0xff]
    %v48 = vld [vmem:[#allocation5 + $0x10] sm:$0xff]
    %v49 = vld [vmem:[#allocation5 + $0x18] sm:$0xff]
    %v50 = vld [vmem:[#allocation5 + $0x20] sm:$0xff]
    %v51 = vld [vmem:[#allocation5 + $0x28] sm:$0xff]
    %v52 = vld [vmem:[#allocation5 + $0x30] sm:$0xff]
    %v53 = vld [vmem:[#allocation5 + $0x38] sm:$0xff]
    %v54 = vld [vmem:[#allocation5 + $0x40] sm:$0xff]
    %v55 = vld [vmem:[#allocation5 + $0x48] sm:$0xff]
    %v56 = vld [vmem:[#allocation5 + $0x50] sm:$0xff]
    %v57 = vld [vmem:[#allocation5 + $0x58] sm:$0xff]
    %v58 = vld [vmem:[#allocation5 + $0x60] sm:$0xff]
    %v59 = vld [vmem:[#allocation5 + $0x68] sm:$0xff]
    %v60 = vld [vmem:[#allocation5 + $0x70] sm:$0xff]
    %v61 = vld [vmem:[#allocation5 + $0x78] sm:$0xff]
    %v62 = vld [vmem:[%s2] sm:$0x1]
    %v64 = vlaneseq
    %v65 = vshrl.u32 %v64, 7
    %v66 = vsub.s32 0, %v65
    %v67 = vrot.slane %v62, %v66
    %69 = vmatprep.subr.mxu0 0.0
    %70 = vmatpush1.msra.mxu0 %v61
    %71 = vmatprep.subr.mxu0 0.0
    %72 = vmatpush1.msra.mxu0 %v60
    %73 = vmatprep.subr.mxu0 0.0
    %74 = vmatpush1.msra.mxu0 %v59
    %75 = vmatprep.subr.mxu0 0.0
    %76 = vmatpush1.msra.mxu0 %v58
    %77 = vmatprep.subr.mxu0 0.0
    %78 = vmatpush1.msra.mxu0 %v57
    %79 = vmatprep.subr.mxu0 0.0
    %80 = vmatpush1.msra.mxu0 %v56
    %81 = vmatprep.subr.mxu0 0.0
    %82 = vmatpush1.msra.mxu0 %v55
    %83 = vmatprep.subr.mxu0 0.0
    %84 = vmatpush1.msra.mxu0 %v54
    %85 = vmatprep.subr.mxu0 0.0
    %86 = vmatpush1.msra.mxu0 %v53
    %87 = vmatprep.subr.mxu0 0.0
    %88 = vmatpush1.msra.mxu0 %v52
    %89 = vmatprep.subr.mxu0 0.0
    %90 = vmatpush1.msra.mxu0 %v51
    %91 = vmatprep.subr.mxu0 0.0
    %92 = vmatpush1.msra.mxu0 %v50
    %93 = vmatprep.subr.mxu0 0.0
    %94 = vmatpush1.msra.mxu0 %v49
    %95 = vmatprep.subr.mxu0 0.0
    %96 = vmatpush1.msra.mxu0 %v48
    %97 = vmatprep.subr.mxu0 0.0
    %98 = vmatpush1.msra.mxu0 %v47
    %99 = vmatprep.subr.mxu0 0.0
    %100 = vmatpush1.msra.mxu0 %v46
    %101 = vmatprep.subr.mxu0 0.0
    %102 = vmatpush2.msra.mxu0 0.0
    %103 = vmatprep.subr.mxu0 0.0
    %104 = vmatpush2.msra.mxu0 0.0
    %105 = vmatprep.subr.mxu0 0.0
    %106 = vmatpush2.msra.mxu0 0.0
    %107 = vmatprep.subr.mxu0 0.0
    %108 = vmatpush2.msra.mxu0 0.0
    %109 = vmatprep.subr.mxu0 0.0
    %110 = vmatpush2.msra.mxu0 0.0
    %111 = vmatprep.subr.mxu0 0.0
    %112 = vmatpush2.msra.mxu0 0.0
    %113 = vmatprep.subr.mxu0 0.0
    %114 = vmatpush2.msra.mxu0 0.0
    %115 = vmatprep.subr.mxu0 0.0
    %116 = vmatpush2.msra.mxu0 0.0
    %117 = vmatprep.subr.mxu0 0.0
    %118 = vmatpush2.msra.mxu0 0.0
    %119 = vmatprep.subr.mxu0 0.0
    %120 = vmatpush2.msra.mxu0 0.0
    %121 = vmatprep.subr.mxu0 0.0
    %122 = vmatpush2.msra.mxu0 0.0
    %123 = vmatprep.subr.mxu0 0.0
    %124 = vmatpush2.msra.mxu0 0.0
    %125 = vmatprep.subr.mxu0 0.0
    %126 = vmatpush2.msra.mxu0 0.0
    %127 = vmatprep.subr.mxu0 0.0
    %128 = vmatpush2.msra.mxu0 0.0
    %129 = vmatprep.subr.mxu0 0.0
    %130 = vmatpush2.msra.mxu0 0.0
    %131 = vmatprep.subr.mxu0 0.0
    %132 = vmatpush2.msra.mxu0 0.0
    %133 = vmatprep.mubr.f32.mxu0 0.0
    %134 = vmatmul.mubr.f32.gmra.mxu0 %v43
    %v135 = vpop.f32.mrf.mxu0
    %v136 = vadd.f32 %v67, %v135
    %v137 = vpop.f32.mrf.mxu0
    %138 = vmatprep.mubr.f32.mxu0 0.0
    %139 = vmatmul.mubr.f32.gmra.mxu0 %v44
    %v140 = vpop.f32.mrf.mxu0
    %v141 = vadd.f32 %v67, %v140
    %v142 = vpop.f32.mrf.mxu0
    %143 = vmatprep.mubr.f32.mxu0 0.0
    %144 = vmatmul.mubr.f32.gmra.mxu0 %v45
    %v145 = vpop.f32.mrf.mxu0
    %v146 = vadd.f32 %v67, %v145
    %v147 = vpop.f32.mrf.mxu0
    %148 = vdwg.mxu0
    %vm149 = vcmp.ge.f32.partialorder %v136, 0.0
    %vm150 = vcmp.ge.f32.partialorder %v141, 0.0
    %vm151 = vcmp.ge.f32.partialorder %v146, 0.0
    %v152 = vmul.f32 %v136, 0.1
    %v153 = vmul.f32 %v141, 0.1
    %v154 = vmul.f32 %v146, 0.1
    %v155 = vsel %vm149, %v136, %v152
    %v156 = vsel %vm150, %v141, %v153
    %v157 = vsel %vm151, %v146, %v154
    %158 = vst [vmem:[#allocation7] sm:$0xff] %v155
    %159 = vst [vmem:[#allocation7 + $0x8] sm:$0xff] %v156
    %160 = vst [vmem:[#allocation7 + $0x10] sm:$0xff] %v157
    // Predicated region
    $region22: #{tpu_custom_call.1} parent=1 // pred_check
      _
    $region23: #{tpu_custom_call.1} parent=1 // pred_check_branch
      %162 = sbr.rel (0) target = $region25
    $region24: #{tpu_custom_call.1} parent=1 // pred_region
      %s164 = ssub.s32 384, 384
      %165 = vsyncadd [#allocation4], %s164
      %s166 = sshll.u32 [#allocation7], 4
      %s167 = int_to_ptr.vmem [resolvable:$true] %s166
      %172 = dma.vmem_to_hbm [thread:$0]  %s167, 384, %s3, [#allocation4], 128, 128, 8
    $region25: #{tpu_custom_call.1} parent=1 // pred_fallthru
      _
    // Predicated region
    $region26: #{tpu_custom_call.1} parent=1 // pred_check
      _
    $region27: #{tpu_custom_call.1} parent=1 // pred_check_branch
      %174 = sbr.rel (0) target = $region29
    $region28: #{tpu_custom_call.1} parent=1 // pred_region
      %175 = dma.done [#allocation4], 384
    $region29: #{tpu_custom_call.1} parent=1 // pred_fallthru
      _
    %176 = vsyncpa [#allocation3], 1
    %177 = vsyncpa [#allocation6], 1
    %178 = vsyncpa [#allocation4], 1

</llo_original>
